<compile_context>
chip_gen: v7x
topology: tpu7x:2x2x1
jax: 0.10.0
libtpu: 0.0.40
codegen_flags: <defaults>
</compile_context>

<pallas_src>
import functools

import jax
import jax.numpy as jnp
from jax.experimental import pallas as pl
from jax.experimental.pallas import tpu as pltpu

POLY2_WEIGHTS = (0.75, -1.0, -1.5)  # deterministic init from set_model_weights('poly2*')
POLY2_SCALE = 2.0
N_MIXTURE = 3


def _mixture_kernel(a_ref, g_ref, x_ref, out_ref, *, n_components, b):
    """Hot path (lane-dense layout):
       x_ref is (D, block_n); batch sits on lanes.
       f_k = a_k * S1 + b * S2 + g_k, then stable logsumexp over K components."""
    xt = x_ref[...]                                   # (D, block_n) f32 in VMEM
    s1 = jnp.sum(xt, axis=0, keepdims=True)           # (1, block_n)  sum_d x_d
    s2 = jnp.sum(xt * xt, axis=0, keepdims=True)      # (1, block_n)  sum_d x_d^2
    base = b * s2                                     # component-independent term

    # K is tiny and static -> unroll in Python. a_k, g_k are SMEM scalars.
    f = [a_ref[k] * s1 + base + g_ref[k] for k in range(n_components)]

    # Stable logsumexp over the K mixture components (running max / sum, no concat).
    m = f[0]
    for k in range(1, n_components):
        m = jnp.maximum(m, f[k])
    acc = jnp.exp(f[0] - m)
    for k in range(1, n_components):
        acc = acc + jnp.exp(f[k] - m)
    out_ref[...] = m + jnp.log(acc)                   # (1, block_n), lane-dense store


def mixture_forward(x, a_coefs, g_consts, *, b_coef, block_n=8192):
    """x: (N, D) f32. Returns (N,) f32 mixture log-densities."""
    N, D = x.shape
    K = int(a_coefs.shape[0])

    # Lane-dense tile: block_n a multiple of 128, clamped so tiny inputs still work.
    block_n = min(int(block_n), pl.next_power_of_2(max(N, 128)))
    block_n = max(128, (block_n // 128) * 128)

    n_pad = (-N) % block_n
    Np = N + n_pad
    x_pad = jnp.pad(x, ((0, n_pad), (0, 0))) if n_pad else x
    xt = x_pad.T                                      # (D, Np): N on the lane axis

    kernel = functools.partial(_mixture_kernel, n_components=K, b=float(b_coef))

    cost = pl.CostEstimate(
        flops=3 * Np * D + 20 * Np,                   # per-elem poly fold + per-row mixture math
        transcendentals=4 * Np,                       # K exp + 1 log per row
        bytes_accessed=Np * D * 4 + Np * 4 + 8 * K,
    )

    out = pl.pallas_call(
        kernel,
        out_shape=jax.ShapeDtypeStruct((1, Np), jnp.float32),
        grid=(Np // block_n,),
        in_specs=[
            pl.BlockSpec(memory_space=pltpu.MemorySpace.SMEM),   # a_k  (K,)
            pl.BlockSpec(memory_space=pltpu.MemorySpace.SMEM),   # g_k  (K,)
            pl.BlockSpec((D, block_n), lambda i: (0, i)),        # x tile (lane-dense)
        ],
        out_specs=pl.BlockSpec((1, block_n), lambda i: (0, i)),  # lane-dense output
        compiler_params=pltpu.CompilerParams(
            dimension_semantics=("parallel",),                   # shards grid across TCs on v7x
            vmem_limit_bytes=32 * 1024 * 1024,                   # safe on v5e/v6e/v7x
        ),
        cost_estimate=cost,
    )(a_coefs, g_consts, xt)
    return out[0, :N]


def build_params(state_space_1d, data_dim, n_mixture=N_MIXTURE):
    """Deterministic parameter setup (plain JAX glue).

    Returns torch-faithful params (shifts, logz, weights) for the reference plus the
    folded per-component coefficients used by the kernel:
        f_k(x) = a_k * S1 + b * S2 + g_k,
        S1 = sum_d x_d, S2 = sum_d x_d^2, c_k = shift_k * scale,
        a_k = scale*(w1 + 2*w2*c_k),  b = w2*scale^2,
        g_k = D*(w0 + w1*c_k + w2*c_k^2 - logZ_k) + log(1/K).
    """
    w0, w1, w2 = (jnp.float32(w) for w in POLY2_WEIGHTS)
    scale = jnp.float32(POLY2_SCALE)
    shifts = -jnp.linspace(0.0, 2.0, n_mixture).astype(jnp.float32)     # [-0, -1, -2]
    weights = jnp.asarray(POLY2_WEIGHTS, dtype=jnp.float32)

    # Per-component log normalizer over the 1-d state space (scalar each).
    u = (state_space_1d[None, :] + shifts[:, None]) * scale             # (K, S)
    f = w0 + w1 * u + w2 * (u * u)
    logz = jax.scipy.special.logsumexp(f, axis=-1)                      # (K,)

    c = shifts * scale                                                  # (K,)
    D = jnp.float32(data_dim)
    a = scale * (w1 + 2.0 * w2 * c)                                     # (K,)
    b = float(POLY2_WEIGHTS[2]) * float(POLY2_SCALE) ** 2               # static python float
    g = D * (w0 + w1 * c + w2 * c * c - logz) + jnp.log(jnp.float32(1.0 / n_mixture))
    return shifts, logz, weights, a.astype(jnp.float32), b, g.astype(jnp.float32)


def reference_forward(x, shifts, logz, weights):
    """Pure-JAX reference mirroring the torch forward (unfolded form)."""
    u = (x[:, None, :] + shifts[None, :, None]) * POLY2_SCALE           # (N, K, D)
    f = weights[0] + weights[1] * u + weights[2] * (u * u)
    fk = f.sum(-1) - x.shape[1] * logz[None, :]                          # (N, K)
    fk = fk + jnp.log(1.0 / shifts.shape[0])
    return jax.scipy.special.logsumexp(fk, axis=-1)                     # (N,)


if __name__ == "__main__":
    # Small deterministic example: batch N=1024, data_dim D=16, 20-state 1-d state space.
    # block_n=256 keeps the grid at 4 steps to exercise tiling; production default is 8192.
    N, D = 1024, 16
    state_space_1d = jnp.linspace(-1.0, 1.0, 20, dtype=jnp.float32)

    key = jax.random.PRNGKey(0)
    x = jax.random.uniform(key, (N, D), dtype=jnp.float32, minval=-1.0, maxval=1.0)

    shifts, logz, weights, a_coefs, b_coef, g_consts = build_params(state_space_1d, data_dim=D)

    out = mixture_forward(x, a_coefs, g_consts, b_coef=b_coef, block_n=256)
    out = jax.block_until_ready(out)

    ref = reference_forward(x, shifts, logz, weights)
    assert out.shape == (N,)
    assert jnp.allclose(out, ref, atol=1e-4, rtol=1e-4), (out, ref)

    print("KERNEL_OK")
</pallas_src>

<mosaic_0001>
module attributes {stable_mosaic.version = 11 : i64} {
  func.func @_mixture_kernel(%arg0: i32, %arg1: memref<3xf32, #tpu.memory_space<smem>>, %arg2: memref<3xf32, #tpu.memory_space<smem>>, %arg3: memref<16x256xf32, #tpu.memory_space<vmem>>, %arg4: memref<1x256xf32, #tpu.memory_space<vmem>>) attributes {dimension_semantics = [#tpu.dimension_semantics<parallel>], iteration_bounds = array<i64: 4>, scalar_prefetch = 0 : i64, scratch_operands = 0 : i64, tpu.core_type = #tpu.core_type<tc>, window_params = [{transform_indices = @transform_0, window_bounds = array<i64: 3>}, {transform_indices = @transform_1, window_bounds = array<i64: 3>}, {transform_indices = @transform_2, window_bounds = array<i64: 16, 256>}, {transform_indices = @transform_3, window_bounds = array<i64: 1, 256>}]} {
    %c0 = arith.constant 0 : index
    %c0_0 = arith.constant 0 : index
    %0 = vector.load %arg3[%c0, %c0_0] : memref<16x256xf32, #tpu.memory_space<vmem>>, vector<16x256xf32>
    %cst = arith.constant dense<0.000000e+00> : vector<256xf32>
    %1 = vector.multi_reduction <add>, %0, %cst [0] : vector<16x256xf32> to vector<256xf32>
    %2 = vector.shape_cast %1 : vector<256xf32> to vector<1x256xf32>
    %3 = arith.mulf %0, %0 : vector<16x256xf32>
    %cst_1 = arith.constant dense<0.000000e+00> : vector<256xf32>
    %4 = vector.multi_reduction <add>, %3, %cst_1 [0] : vector<16x256xf32> to vector<256xf32>
    %5 = vector.shape_cast %4 : vector<256xf32> to vector<1x256xf32>
    %cst_2 = arith.constant -6.000000e+00 : f32
    %6 = vector.broadcast %cst_2 : f32 to vector<1x256xf32>
    %7 = arith.mulf %6, %5 : vector<1x256xf32>
    %c0_3 = arith.constant 0 : index
    %8 = memref.load %arg1[%c0_3] : memref<3xf32, #tpu.memory_space<smem>>
    %9 = vector.broadcast %8 : f32 to vector<1x256xf32>
    %10 = arith.mulf %9, %2 : vector<1x256xf32>
    %11 = arith.addf %10, %7 : vector<1x256xf32>
    %c0_4 = arith.constant 0 : index
    %12 = memref.load %arg2[%c0_4] : memref<3xf32, #tpu.memory_space<smem>>
    %13 = vector.broadcast %12 : f32 to vector<1x256xf32>
    %14 = arith.addf %11, %13 : vector<1x256xf32>
    %c1 = arith.constant 1 : index
    %15 = memref.load %arg1[%c1] : memref<3xf32, #tpu.memory_space<smem>>
    %16 = vector.broadcast %15 : f32 to vector<1x256xf32>
    %17 = arith.mulf %16, %2 : vector<1x256xf32>
    %18 = arith.addf %17, %7 : vector<1x256xf32>
    %c1_5 = arith.constant 1 : index
    %19 = memref.load %arg2[%c1_5] : memref<3xf32, #tpu.memory_space<smem>>
    %20 = vector.broadcast %19 : f32 to vector<1x256xf32>
    %21 = arith.addf %18, %20 : vector<1x256xf32>
    %c2 = arith.constant 2 : index
    %22 = memref.load %arg1[%c2] : memref<3xf32, #tpu.memory_space<smem>>
    %23 = vector.broadcast %22 : f32 to vector<1x256xf32>
    %24 = arith.mulf %23, %2 : vector<1x256xf32>
    %25 = arith.addf %24, %7 : vector<1x256xf32>
    %c2_6 = arith.constant 2 : index
    %26 = memref.load %arg2[%c2_6] : memref<3xf32, #tpu.memory_space<smem>>
    %27 = vector.broadcast %26 : f32 to vector<1x256xf32>
    %28 = arith.addf %25, %27 : vector<1x256xf32>
    %29 = arith.maximumf %14, %21 : vector<1x256xf32>
    %30 = arith.maximumf %29, %28 : vector<1x256xf32>
    %31 = arith.subf %14, %30 : vector<1x256xf32>
    %32 = math.exp %31 : vector<1x256xf32>
    %33 = arith.subf %21, %30 : vector<1x256xf32>
    %34 = math.exp %33 : vector<1x256xf32>
    %35 = arith.addf %32, %34 : vector<1x256xf32>
    %36 = arith.subf %28, %30 : vector<1x256xf32>
    %37 = math.exp %36 : vector<1x256xf32>
    %38 = arith.addf %35, %37 : vector<1x256xf32>
    %39 = math.log %38 : vector<1x256xf32>
    %40 = arith.addf %30, %39 : vector<1x256xf32>
    %c0_7 = arith.constant 0 : index
    %c0_8 = arith.constant 0 : index
    %41 = vector.load %arg4[%c0_7, %c0_8] : memref<1x256xf32, #tpu.memory_space<vmem>>, vector<1x256xf32>
    tpu.vector_store %arg4[%c0_7, %c0_8], %40 {strides = array<i32>} : memref<1x256xf32, #tpu.memory_space<vmem>>, vector<1x256xf32>,
    return
  }
  func.func @transform_0(%arg0: i32) -> i32 {
    %c0_i32 = arith.constant 0 : i32
    %c0_i32_0 = arith.constant 0 : i32
    return %c0_i32 : i32
  }
  func.func @transform_1(%arg0: i32) -> i32 {
    %c0_i32 = arith.constant 0 : i32
    %c0_i32_0 = arith.constant 0 : i32
    return %c0_i32 : i32
  }
  func.func @transform_2(%arg0: i32) -> (i32, i32) {
    %c0_i32 = arith.constant 0 : i32
    %c0_i32_0 = arith.constant 0 : i32
    return %c0_i32, %arg0 : i32, i32
  }
  func.func @transform_3(%arg0: i32) -> (i32, i32) {
    %c0_i32 = arith.constant 0 : i32
    %c0_i32_0 = arith.constant 0 : i32
    return %c0_i32, %arg0 : i32, i32
  }
}

</mosaic_0001>

<llo_original>
// kernel: tpu_custom_call.1
$region0: #{tpu_custom_call.1}
  #allocation0 [shape = 'u32[]', space=smem, size = 0x4, offset = 0x4, fixed_abs, tag = 'smem constant byte address 0x4 - core index']
  #allocation1 [shape = 'u32[144,128]{1,0:T(1,128)}', space=vmem, size = 0x12000, scoped, tag = 'internal scratch']
  %s0 = inlined_call_operand.hbm [shape: f32[3], index: 0, kind: input, shape index: {}]
  %s1 = inlined_call_operand.vmem [shape: f32[3], index: 1, kind: input, shape index: {}]
  %s2 = inlined_call_operand.hbm [shape: f32[16,1024], index: 2, kind: input, shape index: {}]
  %s3 = inlined_call_operand.hbm [shape: f32[1,1024], index: 3, kind: output, shape index: {}]
  %s4 = sld [smem:[#allocation0]]
  $region57: #{tpu_custom_call.1} parent=0
    _
  %s6 = ssub.s32 1, %s4
  %s7 = scalar_select 0, %s6, %s4
  $region1: #{tpu_custom_call.1} parent=0
    #allocation2 [shape = 'u8[512]{0}', space=smem, size = 0x200, scoped, tag = 'input window, operand 0, single buffered']
    #allocation3 [shape = 's32[2]{0}', space=sflag, size = 0x8, scoped, tag = 'scoped memory for tpu_custom_call.1']
    #allocation4 [shape = 's32[2]{0}', space=sflag, size = 0x8, scoped, tag = 'scoped memory for tpu_custom_call.1']
    #allocation5 [shape = 's32[2]{0}', space=sflag, size = 0x8, scoped, tag = 'scoped memory for tpu_custom_call.1']
    #allocation6 [shape = 's32[2]{0}', space=sflag, size = 0x8, scoped, tag = 'scoped memory for tpu_custom_call.1']
    #allocation7 [shape = 'u8[512]{0}', space=smem, size = 0x200, scoped, tag = 'input window, operand 1, single buffered']
    #allocation8 [shape = 'u8[32768]{0}', space=vmem, size = 0x8000, scoped, tag = 'input window, operand 2']
    #allocation9 [shape = 'u8[2048]{0}', space=vmem, size = 0x800, scoped, tag = 'output window, operand 0']
    %8 = vsyncpa [#allocation5], 0
    %9 = vsyncpa [#allocation6], 0
    %10 = vsyncpa [#allocation3], 0
    %s11 = scalar_lea.sflag [#allocation3], 1
    %12 = vsyncpa %s11, 0
    %13 = vsyncpa [#allocation4], 0
    %s14 = scalar_lea.sflag [#allocation4], 1
    %15 = vsyncpa %s14, 0
    loop: start=0, step=1, limit=6
    $region2: #{tpu_custom_call.1} parent=1 // loop_pre_header
      _
    $region3: #{tpu_custom_call.1} parent=1 // loop_header
      %s17 = sphi 0, %s21
      %p18 = scmp.ge.s32.totalorder %s17, 6
      %s25 = sphi 0, %s25
      %s27 = sphi 0, %s25
      %s28 = sphi 0, %s27
      %s42 = sphi 0, %s28
      %s46 = sphi 0, %s46
      %s48 = sphi 0, %s46
      %s49 = sphi 0, %s48
      %s63 = sphi 0, %s49
      %s69 = sphi 0, %s71
      %s72 = sphi 0, %s69
      %s73 = sphi 0, %s72
      %s89 = sphi 0, %s73
      %s95 = sphi 0, %s97
      %s98 = sphi 0, %s95
      %s99 = sphi 0, %s98
      %s115 = sphi 0, %s99
    $region4: #{tpu_custom_call.1} parent=1 // loop_header_branch
      %20 = sbr.rel (%p18) target = $region8
    $region5: #{tpu_custom_call.1} parent=1 // loop_body
      %s22 = ssub.s32 %s17, 1
      %s23 = ssub.s32 %s17, 2
      %s24 = sadd.s32 %s17, 1
      %s26 = sadd.s32 %s25, 1
      %p29 = scmp.eq.s32.totalorder %s17, 3
      %p30 = scmp.ne.s32.totalorder %s25, %s27
      %p31 = scmp.eq.s32.totalorder %s17, 0
      %p32 = por %p30, %p31
      %p33 = scmp.ne.s32.totalorder %s25, %s27
      %p34 = scmp.eq.s32.totalorder %s22, 3
      %p35 = por %p33, %p34
      %p36 = scmp.ne.s32.totalorder %s27, %s28
      %p37 = scmp.eq.s32.totalorder %s22, 0
      %p38 = por %p36, %p37
      %p39 = scmp.ne.s32.totalorder %s27, %s28
      %p40 = scmp.eq.s32.totalorder %s23, 3
      %p41 = por %p39, %p40
      %p43 = scmp.ne.s32.totalorder %s28, %s42
      %p44 = scmp.eq.s32.totalorder %s23, 0
      %p45 = por %p43, %p44
      %s47 = sadd.s32 %s46, 1
      %p50 = scmp.eq.s32.totalorder %s17, 3
      %p51 = scmp.ne.s32.totalorder %s46, %s48
      %p52 = scmp.eq.s32.totalorder %s17, 0
      %p53 = por %p51, %p52
      %p54 = scmp.ne.s32.totalorder %s46, %s48
      %p55 = scmp.eq.s32.totalorder %s22, 3
      %p56 = por %p54, %p55
      %p57 = scmp.ne.s32.totalorder %s48, %s49
      %p58 = scmp.eq.s32.totalorder %s22, 0
      %p59 = por %p57, %p58
      %p60 = scmp.ne.s32.totalorder %s48, %s49
      %p61 = scmp.eq.s32.totalorder %s23, 3
      %p62 = por %p60, %p61
      %p64 = scmp.ne.s32.totalorder %s49, %s63
      %p65 = scmp.eq.s32.totalorder %s23, 0
      %p66 = por %p64, %p65
      %s67 = ssub.s32 %s17, %s24
      %p68 = scmp.eq.s32.totalorder %s67, 0
      %s70 = sadd.s32 %s69, 1
      %s71 = scalar_select %p68, %s69, %s70
      %p74 = pneg %p68
      %p75 = scmp.eq.s32.totalorder %s17, 3
      %p76 = por %p74, %p75
      %p77 = scmp.ne.s32.totalorder %s69, %s72
      %p78 = scmp.eq.s32.totalorder %s17, 0
      %p79 = por %p77, %p78
      %p80 = scmp.ne.s32.totalorder %s69, %s72
      %p81 = scmp.eq.s32.totalorder %s22, 3
      %p82 = por %p80, %p81
      %p83 = scmp.ne.s32.totalorder %s72, %s73
      %p84 = scmp.eq.s32.totalorder %s22, 0
      %p85 = por %p83, %p84
      %p86 = scmp.ne.s32.totalorder %s72, %s73
      %p87 = scmp.eq.s32.totalorder %s23, 3
      %p88 = por %p86, %p87
      %p90 = scmp.ne.s32.totalorder %s73, %s89
      %p91 = scmp.eq.s32.totalorder %s23, 0
      %p92 = por %p90, %p91
      %s93 = ssub.s32 %s17, %s24
      %p94 = scmp.eq.s32.totalorder %s93, 0
      %s96 = sadd.s32 %s95, 1
      %s97 = scalar_select %p94, %s95, %s96
      %p100 = pneg %p94
      %p101 = scmp.eq.s32.totalorder %s17, 3
      %p102 = por %p100, %p101
      %p103 = scmp.ne.s32.totalorder %s95, %s98
      %p104 = scmp.eq.s32.totalorder %s17, 0
      %p105 = por %p103, %p104
      %p106 = scmp.ne.s32.totalorder %s95, %s98
      %p107 = scmp.eq.s32.totalorder %s22, 3
      %p108 = por %p106, %p107
      %p109 = scmp.ne.s32.totalorder %s98, %s99
      %p110 = scmp.eq.s32.totalorder %s22, 0
      %p111 = por %p109, %p110
      %p112 = scmp.ne.s32.totalorder %s98, %s99
      %p113 = scmp.eq.s32.totalorder %s23, 3
      %p114 = por %p112, %p113
      %p116 = scmp.ne.s32.totalorder %s99, %s115
      %p117 = scmp.eq.s32.totalorder %s23, 0
      %p118 = por %p116, %p117
      %p119 = scmp.le.s32.totalorder 1, %s17
      %p120 = scmp.lt.s32.totalorder %s17, 5
      %p121 = pnand %p119, %p120
      %p122 = pneg %p121
      // Predicated region
      $region9: #{tpu_custom_call.1} parent=5 // pred_check
        _
      $region10: #{tpu_custom_call.1} parent=5 // pred_check_branch
        %124 = sbr.rel (%p121) target = $region12
      $region11: #{tpu_custom_call.1} parent=5 // pred_region
        %s125 = ssub.s32 %s17, 1
        // Predicated region
        $region13: #{tpu_custom_call.1} parent=11 // pred_check
          %p126 = pneg %p38
        $region14: #{tpu_custom_call.1} parent=11 // pred_check_branch
          %128 = sbr.rel (%p126) target = $region16
        $region15: #{tpu_custom_call.1} parent=11 // pred_region
          %s130 = ssub.s32 16, 16
          %131 = vsyncadd [#allocation5], %s130
          %134 = dma.hbm_to_smem %s0, 16, [#allocation2], [#allocation5]
        $region16: #{tpu_custom_call.1} parent=11 // pred_fallthru
          _
        // Predicated region
        $region17: #{tpu_custom_call.1} parent=11 // pred_check
          %p135 = pneg %p59
        $region18: #{tpu_custom_call.1} parent=11 // pred_check_branch
          %137 = sbr.rel (%p135) target = $region20
        $region19: #{tpu_custom_call.1} parent=11 // pred_region
          %s139 = ssub.s32 16, 16
          %140 = vsyncadd [#allocation6], %s139
          %s142 = sshll.u32 %s1, 4
          %s143 = int_to_ptr.vmem [resolvable:$true] %s142
          %145 = dma.vmem_to_smem %s143, 16, [#allocation7], [#allocation6]
        $region20: #{tpu_custom_call.1} parent=11 // pred_fallthru
          _
      $region12: #{tpu_custom_call.1} parent=5 // pred_fallthru
        _
      %p146 = scmp.lt.s32.totalorder %s17, 4
      // Predicated region
      $region21: #{tpu_custom_call.1} parent=5 // pred_check
        %p147 = pneg %p146
      $region22: #{tpu_custom_call.1} parent=5 // pred_check_branch
        %149 = sbr.rel (%p147) target = $region24
      $region23: #{tpu_custom_call.1} parent=5 // pred_region
        // Predicated region
        $region25: #{tpu_custom_call.1} parent=23 // pred_check
          %p150 = pneg %p79
        $region26: #{tpu_custom_call.1} parent=23 // pred_check_branch
          %152 = sbr.rel (%p150) target = $region28
        $region27: #{tpu_custom_call.1} parent=23 // pred_region
          %s153 = sand.u32 %s69, 1
          %s154 = scalar_lea.sflag [#allocation3], %s153
          %s155 = sand.u32 %s69, 1
          %s156 = smul.addr %s155, 32
          %s157 = scalar_lea.vmem [#allocation8], %s156
          %s158 = smul.u32 2, %s17
          %s160 = ssub.s32 512, 512
          %161 = vsyncadd %s154, %s160
          %s162 = smul.addr %s158, 128
          %s163 = scalar_lea.hbm %s2, %s162
          %s164 = sshll.u32 %s157, 4
          %s165 = int_to_ptr.vmem [resolvable:$true] %s164
          %170 = dma.hbm_to_vmem [thread:$0]  %s163, 512, %s165, %s154, 1024, 256, 16
        $region28: #{tpu_custom_call.1} parent=23 // pred_fallthru
          _
      $region24: #{tpu_custom_call.1} parent=5 // pred_fallthru
        _
      %p171 = scmp.le.s32.totalorder 1, %s17
      %p172 = scmp.lt.s32.totalorder %s17, 5
      %p173 = pnand %p171, %p172
      %p174 = pneg %p173
      // Predicated region
      $region29: #{tpu_custom_call.1} parent=5 // pred_check
        _
      $region30: #{tpu_custom_call.1} parent=5 // pred_check_branch
        %176 = sbr.rel (%p173) target = $region32
      $region31: #{tpu_custom_call.1} parent=5 // pred_region
        %s177 = ssub.s32 %s17, 1
        // Predicated region
        $region33: #{tpu_custom_call.1} parent=31 // pred_check
          %p178 = pneg %p38
        $region34: #{tpu_custom_call.1} parent=31 // pred_check_branch
          %180 = sbr.rel (%p178) target = $region36
        $region35: #{tpu_custom_call.1} parent=31 // pred_region
          %181 = dma.done [#allocation5], 16
        $region36: #{tpu_custom_call.1} parent=31 // pred_fallthru
          _
        // Predicated region
        $region37: #{tpu_custom_call.1} parent=31 // pred_check
          %p182 = pneg %p59
        $region38: #{tpu_custom_call.1} parent=31 // pred_check_branch
          %184 = sbr.rel (%p182) target = $region40
        $region39: #{tpu_custom_call.1} parent=31 // pred_region
          %185 = dma.done [#allocation6], 16
        $region40: #{tpu_custom_call.1} parent=31 // pred_fallthru
          _
        %s186 = sand.u32 %s72, 1
        %s187 = scalar_lea.sflag [#allocation3], %s186
        %s188 = sand.u32 %s72, 1
        %s189 = smul.addr %s188, 32
        %s190 = scalar_lea.vmem [#allocation8], %s189
        // Predicated region
        $region41: #{tpu_custom_call.1} parent=31 // pred_check
          %p191 = pneg %p85
        $region42: #{tpu_custom_call.1} parent=31 // pred_check_branch
          %193 = sbr.rel (%p191) target = $region44
        $region43: #{tpu_custom_call.1} parent=31 // pred_region
          %194 = dma.done %s187, 512
        $region44: #{tpu_custom_call.1} parent=31 // pred_fallthru
          _
        %195 = sfence
        %p196 = pneg %p38
        %p197 = pneg %p35
        %p198 = pneg %p59
        %p199 = pneg %p56
        %s200 = sand.u32 %s72, 1
        %s201 = scalar_lea.sflag [#allocation3], %s200
        %s202 = sand.u32 %s72, 1
        %s203 = smul.addr %s202, 32
        %s204 = scalar_lea.vmem [#allocation8], %s203
        %p205 = pneg %p85
        %p206 = pneg %p82
        %p207 = pneg %p111
        %p208 = pneg %p108
        %s209 = sand.u32 %s98, 1
        %s210 = scalar_lea.sflag [#allocation4], %s209
        %s211 = sand.u32 %s98, 1
        %s212 = smul.addr %s211, 2
        %s213 = scalar_lea.vmem [#allocation9], %s212
        %s214 = smul.u32 2, %s22
        %s215 = smul.u32 2, %s22
        %v216 = vld [vmem:[%s190] sm:$0xff]
        %v217 = vld [vmem:[%s190 + $0x8] sm:$0xff]
        %v218 = vld [vmem:[%s190 + $0x10] sm:$0xff]
        %v219 = vld [vmem:[%s190 + $0x18] sm:$0xff]
        %v220 = vadd.f32 %v216, %v218
        %v221 = vrot.slane %v220, 4
        %v222 = vadd.f32 %v220, %v221
        %v223 = vrot.slane %v222, 2
        %v224 = vadd.f32 %v222, %v223
        %v225 = vrot.slane %v224, 1
        %v226 = vadd.f32 %v224, %v225
        %v227 = vadd.f32 %v217, %v219
        %v228 = vrot.slane %v227, 4
        %v229 = vadd.f32 %v227, %v228
        %v230 = vrot.slane %v229, 2
        %v231 = vadd.f32 %v229, %v230
        %v232 = vrot.slane %v231, 1
        %v233 = vadd.f32 %v231, %v232
        %v234 = vmul.f32 %v216, %v216
        %v235 = vmul.f32 %v217, %v217
        %v236 = vmul.f32 %v218, %v218
        %v237 = vmul.f32 %v219, %v219
        %v238 = vadd.f32 %v234, %v236
        %v239 = vrot.slane %v238, 4
        %v240 = vadd.f32 %v238, %v239
        %v241 = vrot.slane %v240, 2
        %v242 = vadd.f32 %v240, %v241
        %v243 = vrot.slane %v242, 1
        %v244 = vadd.f32 %v242, %v243
        %v245 = vadd.f32 %v235, %v237
        %v246 = vrot.slane %v245, 4
        %v247 = vadd.f32 %v245, %v246
        %v248 = vrot.slane %v247, 2
        %v249 = vadd.f32 %v247, %v248
        %v250 = vrot.slane %v249, 1
        %v251 = vadd.f32 %v249, %v250
        %v252 = vmul.f32 %v244, -6.0
        %v253 = vmul.f32 %v251, -6.0
        %s254 = sld [smem:[#allocation2]]
        %v255 = vstv %s254
        %v256 = vmul.f32 %v255, %v226
        %v257 = vmul.f32 %v255, %v233
        %v258 = vadd.f32 %v256, %v252
        %v259 = vadd.f32 %v257, %v253
        %s260 = sld [smem:[#allocation7]]
        %v261 = vstv %s260
        %v262 = vadd.f32 %v258, %v261
        %v263 = vadd.f32 %v259, %v261
        %s264 = sld [smem:[#allocation2 + $0x1]]
        %v265 = vstv %s264
        %v266 = vmul.f32 %v265, %v226
        %v267 = vmul.f32 %v265, %v233
        %v268 = vadd.f32 %v266, %v252
        %v269 = vadd.f32 %v267, %v253
        %s270 = sld [smem:[#allocation7 + $0x1]]
        %v271 = vstv %s270
        %v272 = vadd.f32 %v268, %v271
        %v273 = vadd.f32 %v269, %v271
        %s274 = sld [smem:[#allocation2 + $0x2]]
        %v275 = vstv %s274
        %v276 = vmul.f32 %v275, %v226
        %v277 = vmul.f32 %v275, %v233
        %v278 = vadd.f32 %v276, %v252
        %v279 = vadd.f32 %v277, %v253
        %s280 = sld [smem:[#allocation7 + $0x2]]
        %v281 = vstv %s280
        %v282 = vadd.f32 %v278, %v281
        %v283 = vadd.f32 %v279, %v281
        %v284 = vmax.f32 %v262, %v272
        %v285 = vmax.f32 %v263, %v273
        %v286 = vmax.f32 %v284, %v282
        %v287 = vmax.f32 %v285, %v283
        %v288 = vsub.f32 %v262, %v286
        %v289 = vsub.f32 %v263, %v287
        %v290 = vmul.f32 %v288, 1.442695
        %v291 = vpow.pop %v290
        %v292 = vmul.f32 %v289, 1.442695
        %v293 = vpow.pop %v292
        %v294 = vsub.f32 %v272, %v286
        %v295 = vsub.f32 %v273, %v287
        %v296 = vmul.f32 %v294, 1.442695
        %v297 = vpow.pop %v296
        %v298 = vmul.f32 %v295, 1.442695
        %v299 = vpow.pop %v298
        %v300 = vadd.f32 %v291, %v297
        %v301 = vadd.f32 %v293, %v299
        %v302 = vsub.f32 %v282, %v286
        %v303 = vsub.f32 %v283, %v287
        %v304 = vmul.f32 %v302, 1.442695
        %v305 = vpow.pop %v304
        %v306 = vmul.f32 %v303, 1.442695
        %v307 = vpow.pop %v306
        %v308 = vadd.f32 %v300, %v305
        %v309 = vadd.f32 %v301, %v307
        %v310 = vlog2.pop %v308
        %v311 = vmul.f32 %v310, 0.6931472
        %v312 = vlog2.pop %v309
        %v313 = vmul.f32 %v312, 0.6931472
        %v314 = vadd.f32 %v286, %v311
        %v315 = vadd.f32 %v287, %v313
        %v318 = vcombine.low %v314, %v315
        %v320 = vunpack.c.l.s4 1966171168
        %v321 = vunpack.c.0.s8 %v320
        %v322 = vlaneseq
        %v323 = vshrl.u32 %v322, 7
        %v324 = vsub.s32 %v321, %v323
        %v325 = vrot.slane %v318, %v324
        %v327 = vunpack.c.l.s4 1966171168
        %v328 = vunpack.c.0.s8 %v327
        %v329 = vlaneseq
        %v330 = vshrl.u32 %v329, 7
        %v331 = vsub.s32 %v328, %v330
        %v332 = vrot.slane %v325, %v331
        %v334 = vlaneseq
        %vm335 = vcmp.ge.s32.totalorder %v334, 0
        %vm336 = vcmp.lt.s32.totalorder %v334, 256
        %vm337 = vmand %vm335, %vm336
        %338 = vst.msk [vmem:[%s213] sm:$0x3] %vm337, %v332
        %s339 = sand.u32 %s98, 1
        %s340 = scalar_lea.sflag [#allocation4], %s339
        %s341 = sand.u32 %s98, 1
        %s342 = smul.addr %s341, 2
        %s343 = scalar_lea.vmem [#allocation9], %s342
        // Predicated region
        $region45: #{tpu_custom_call.1} parent=31 // pred_check
          %p344 = pneg %p108
        $region46: #{tpu_custom_call.1} parent=31 // pred_check_branch
          %346 = sbr.rel (%p344) target = $region48
        $region47: #{tpu_custom_call.1} parent=31 // pred_region
          %s347 = smul.u32 2, %s22
          %s349 = ssub.s32 32, 32
          %350 = vsyncadd %s340, %s349
          %s351 = smul.addr %s347, 16
          %s352 = scalar_lea.hbm %s3, %s351
          %s354 = sshll.u32 %s343, 4
          %s355 = int_to_ptr.vmem [resolvable:$true] %s354
          %357 = dma.vmem_to_hbm [thread:$0]  %s355, 32, %s352, %s340
        $region48: #{tpu_custom_call.1} parent=31 // pred_fallthru
          _
      $region32: #{tpu_custom_call.1} parent=5 // pred_fallthru
        _
      %p358 = scmp.le.s32.totalorder 2, %s17
      // Predicated region
      $region49: #{tpu_custom_call.1} parent=5 // pred_check
        %p359 = pneg %p358
      $region50: #{tpu_custom_call.1} parent=5 // pred_check_branch
        %361 = sbr.rel (%p359) target = $region52
      $region51: #{tpu_custom_call.1} parent=5 // pred_region
        %s362 = ssub.s32 %s17, 2
        // Predicated region
        $region53: #{tpu_custom_call.1} parent=51 // pred_check
          %p363 = pneg %p114
        $region54: #{tpu_custom_call.1} parent=51 // pred_check_branch
          %365 = sbr.rel (%p363) target = $region56
        $region55: #{tpu_custom_call.1} parent=51 // pred_region
          %s366 = sand.u32 %s99, 1
          %s367 = scalar_lea.sflag [#allocation4], %s366
          %s368 = sand.u32 %s99, 1
          %s369 = smul.addr %s368, 2
          %s370 = scalar_lea.vmem [#allocation9], %s369
          %371 = dma.done %s367, 32
        $region56: #{tpu_custom_call.1} parent=51 // pred_fallthru
          _
      $region52: #{tpu_custom_call.1} parent=5 // pred_fallthru
        _
    $region6: #{tpu_custom_call.1} parent=1 // loop_footer
      %s21 = sadd.s32 1, %s17
    $region7: #{tpu_custom_call.1} parent=1 // loop_footer_branch
      %16 = sbr.rel target = $region3
    $region8: #{tpu_custom_call.1} parent=1 // loop_exit
      _
    %372 = vsyncpa [#allocation3], 1
    %s373 = scalar_lea.sflag [#allocation3], 1
    %374 = vsyncpa %s373, 1
    %375 = vsyncpa [#allocation4], 1
    %s376 = scalar_lea.sflag [#allocation4], 1
    %377 = vsyncpa %s376, 1
    %378 = vsyncpa [#allocation5], 1
    %s379 = scalar_lea.sflag [#allocation5], 1
    %380 = vsyncpa %s379, 1
    %381 = vsyncpa [#allocation6], 1
    %s382 = scalar_lea.sflag [#allocation6], 1
    %383 = vsyncpa %s382, 1

</llo_original>
